<compile_context>
chip_gen: v6e
topology: v6e:2x2x1
jax: 0.10.0
libtpu: 0.0.40
codegen_flags: <defaults>
</compile_context>

<pallas_src>
import functools

import jax
import jax.numpy as jnp
from jax.experimental import pallas as pl
from jax.experimental.pallas import tpu as pltpu

# --- irreps bookkeeping (static) -------------------------------------------
N_SCALAR = 8                       # 8x0e
GATED_MULS_LS = [(4, 1), (2, 2)]   # 4x1o + 2x2e
N_GATE = sum(m for m, _ in GATED_MULS_LS)                    # 6
GATED_DIM = sum(m * (2 * l + 1) for m, l in GATED_MULS_LS)   # 22
D_IN = N_SCALAR + N_GATE + GATED_DIM                         # 36
D_OUT = N_SCALAR + GATED_DIM                                 # 30


def _normalize2mom_const(f, key) -> float:
    # e3nn.math.normalize2mom: constant c s.t. E[(c*f(x))^2] = 1, x ~ N(0,1).
    # TODO(synk): Monte-Carlo estimate; matches e3nn's constant to ~1e-3.
    x = jax.random.normal(key, (1_000_000,), dtype=jnp.float32)
    return float(1.0 / jnp.sqrt(jnp.mean(f(x) ** 2)))


def _make_gate_expand_matrix() -> jnp.ndarray:
    """One-hot [N_GATE, GATED_DIM] mapping each gate scalar to the (2l+1)
    components of its gated irrep channel."""
    idx = []
    g = 0
    for mul, l in GATED_MULS_LS:
        for _ in range(mul):
            idx.extend([g] * (2 * l + 1))
            g += 1
    gate_idx = jnp.array(idx, dtype=jnp.int32)
    return jax.nn.one_hot(gate_idx, N_GATE, axis=0, dtype=jnp.float32)  # (6, 22)


# --- Pallas kernel ----------------------------------------------------------
def _gate_kernel(x_ref, gmat_ref, o_ref, *, c_scalar, c_gate):
    # x_ref: (TN, D_IN)  nodes on sublanes, features on lanes
    # gmat_ref: (N_GATE, GATED_DIM) constant one-hot expansion
    # o_ref: (TN, D_OUT)
    x = x_ref[...].astype(jnp.float32)

    # Activated scalars: one silu over the whole 8-lane slice.
    s = c_scalar * jax.nn.silu(x[:, :N_SCALAR])                             # (TN, 8)

    # All 6 gates activated with a single sigmoid, then expanded 6 -> 22 lanes
    # with a constant one-hot matmul on the otherwise-idle MXU.
    g = c_gate * jax.nn.sigmoid(x[:, N_SCALAR:N_SCALAR + N_GATE])          # (TN, 6)
    g_exp = jnp.dot(g, gmat_ref[...], preferred_element_type=jnp.float32)  # (TN, 22)

    gated = g_exp * x[:, N_SCALAR + N_GATE:]                               # (TN, 22)

    # Single fused store of the whole output tile (no per-irrep masked stores).
    o_ref[...] = jnp.concatenate([s, gated], axis=-1).astype(o_ref.dtype)


def equivariant_gate(x, gmat, c_scalar, c_gate, *, tile_n=4096):
    """x: [N, D_IN] node features -> [N, D_OUT] gated node features."""
    n, d = x.shape
    assert d == D_IN and gmat.shape == (N_GATE, GATED_DIM)

    # Node tile: cap at tile_n, but keep >= 4 grid steps when possible so both
    # v7x TensorCores get work ("parallel" axis) and output writeback of step
    # i-1 overlaps the input fetch of step i+1.  Tile is a sublane multiple.
    quarter = pl.cdiv(pl.cdiv(n, 4), 8) * 8
    tile = max(8, min(tile_n, quarter))
    grid = pl.cdiv(n, tile)

    kernel = functools.partial(_gate_kernel, c_scalar=c_scalar, c_gate=c_gate)
    return pl.pallas_call(
        kernel,
        out_shape=jax.ShapeDtypeStruct((n, D_OUT), x.dtype),
        grid_spec=pltpu.PrefetchScalarGridSpec(
            num_scalar_prefetch=0,
            grid=(grid,),
            in_specs=[
                pl.BlockSpec((tile, D_IN), lambda i: (i, 0)),
                pl.BlockSpec((N_GATE, GATED_DIM), lambda i: (0, 0)),
            ],
            out_specs=pl.BlockSpec((tile, D_OUT), lambda i: (i, 0)),
        ),
        compiler_params=pltpu.CompilerParams(
            dimension_semantics=("parallel",),  # shard node tiles across TCs on v7x
        ),
    )(x, gmat)


# --- pure-JAX reference -----------------------------------------------------
def _reference(x, gmat, c_scalar, c_gate):
    s = c_scalar * jax.nn.silu(x[:, :N_SCALAR])
    g = c_gate * jax.nn.sigmoid(x[:, N_SCALAR:N_SCALAR + N_GATE])
    gated = x[:, N_SCALAR + N_GATE:]
    return jnp.concatenate([s, (g @ gmat) * gated], axis=-1)


if __name__ == "__main__":
    key = jax.random.PRNGKey(0)
    k_x, k_s, k_g = jax.random.split(key, 3)

    # deterministic "parameters": normalize2mom constants (module has no weights)
    c_scalar = _normalize2mom_const(jax.nn.silu, k_s)
    c_gate = _normalize2mom_const(jax.nn.sigmoid, k_g)
    gmat = _make_gate_expand_matrix()

    # node features for 512 atoms, feature dim = gate.irreps_in.dim = 36
    n_nodes = 512
    x = jax.random.normal(k_x, (n_nodes, D_IN), dtype=jnp.float32)

    out = equivariant_gate(x, gmat, c_scalar, c_gate)
    out = jax.block_until_ready(out)

    ref = _reference(x, gmat, c_scalar, c_gate)
    assert out.shape == (n_nodes, D_OUT)
    assert jnp.allclose(out, ref, atol=1e-5, rtol=1e-5)

    print("KERNEL_OK")
</pallas_src>

<mosaic_0001>
module attributes {stable_mosaic.version = 11 : i64} {
  func.func @_gate_kernel(%arg0: i32, %arg1: memref<128x36xf32, #tpu.memory_space<vmem>>, %arg2: memref<6x22xf32, #tpu.memory_space<vmem>>, %arg3: memref<128x30xf32, #tpu.memory_space<vmem>>) attributes {dimension_semantics = [#tpu.dimension_semantics<parallel>], iteration_bounds = array<i64: 4>, scalar_prefetch = 0 : i64, scratch_operands = 0 : i64, tpu.core_type = #tpu.core_type<tc>, window_params = [{transform_indices = @transform_0, window_bounds = array<i64: 128, 36>}, {pipeline_mode = #tpu.pipeline_mode<synchronous>, transform_indices = @transform_1, window_bounds = array<i64: 6, 22>}, {transform_indices = @transform_2, window_bounds = array<i64: 128, 30>}]} {
    %c0 = arith.constant 0 : index
    %c0_0 = arith.constant 0 : index
    %0 = vector.load %arg1[%c0, %c0_0] : memref<128x36xf32, #tpu.memory_space<vmem>>, vector<128x36xf32>
    %1 = vector.extract_strided_slice %0 {offsets = [0, 0], sizes = [128, 8], strides = [1, 1]} : vector<128x36xf32> to vector<128x8xf32>
    %2 = arith.negf %1 : vector<128x8xf32>
    %3 = math.exp %2 : vector<128x8xf32>
    %cst = arith.constant 1.000000e+00 : f32
    %4 = vector.broadcast %cst : f32 to vector<128x8xf32>
    %5 = arith.addf %4, %3 : vector<128x8xf32>
    %6 = arith.divf %4, %5 : vector<128x8xf32>
    %7 = arith.mulf %1, %6 : vector<128x8xf32>
    %cst_1 = arith.constant 1.67439103 : f32
    %8 = vector.broadcast %cst_1 : f32 to vector<128x8xf32>
    %9 = arith.mulf %8, %7 : vector<128x8xf32>
    %10 = vector.extract_strided_slice %0 {offsets = [0, 8], sizes = [128, 6], strides = [1, 1]} : vector<128x36xf32> to vector<128x6xf32>
    %11 = arith.negf %10 : vector<128x6xf32>
    %12 = math.exp %11 : vector<128x6xf32>
    %cst_2 = arith.constant 1.000000e+00 : f32
    %13 = vector.broadcast %cst_2 : f32 to vector<128x6xf32>
    %14 = arith.addf %13, %12 : vector<128x6xf32>
    %15 = arith.divf %13, %14 : vector<128x6xf32>
    %cst_3 = arith.constant 1.84577131 : f32
    %16 = vector.broadcast %cst_3 : f32 to vector<128x6xf32>
    %17 = arith.mulf %16, %15 : vector<128x6xf32>
    %c0_4 = arith.constant 0 : index
    %c0_5 = arith.constant 0 : index
    %18 = vector.load %arg2[%c0_4, %c0_5] : memref<6x22xf32, #tpu.memory_space<vmem>>, vector<6x22xf32>
    %cst_6 = arith.constant dense<0.000000e+00> : vector<128x22xf32>
    %19 = tpu.matmul %17, %18, %cst_6 {dimension_numbers = #tpu.dot_dimension_numbers<[1], [0], [0], [1], [0, 0, 1, 1], [], []>} : vector<128x6xf32>, vector<6x22xf32>, vector<128x22xf32> -> vector<128x22xf32>
    %20 = vector.extract_strided_slice %0 {offsets = [0, 14], sizes = [128, 22], strides = [1, 1]} : vector<128x36xf32> to vector<128x22xf32>
    %21 = arith.mulf %19, %20 : vector<128x22xf32>
    %22 = tpu.concatenate %9, %21 in 1 : vector<128x8xf32>, vector<128x22xf32> -> vector<128x30xf32>
    %c0_7 = arith.constant 0 : index
    %c0_8 = arith.constant 0 : index
    %23 = vector.load %arg3[%c0_7, %c0_8] : memref<128x30xf32, #tpu.memory_space<vmem>>, vector<128x30xf32>
    tpu.vector_store %arg3[%c0_7, %c0_8], %22 {strides = array<i32>} : memref<128x30xf32, #tpu.memory_space<vmem>>, vector<128x30xf32>,
    return
  }
  func.func @transform_0(%arg0: i32) -> (i32, i32) {
    %c0_i32 = arith.constant 0 : i32
    %c0_i32_0 = arith.constant 0 : i32
    return %arg0, %c0_i32 : i32, i32
  }
  func.func @transform_1(%arg0: i32) -> (i32, i32) {
    %c0_i32 = arith.constant 0 : i32
    %c0_i32_0 = arith.constant 0 : i32
    %c0_i32_1 = arith.constant 0 : i32
    return %c0_i32, %c0_i32_0 : i32, i32
  }
  func.func @transform_2(%arg0: i32) -> (i32, i32) {
    %c0_i32 = arith.constant 0 : i32
    %c0_i32_0 = arith.constant 0 : i32
    return %arg0, %c0_i32 : i32, i32
  }
}

</mosaic_0001>

<llo_original>
// kernel: tpu_custom_call.1
$region0: #{tpu_custom_call.1}
  #allocation0 [shape = 'u32[]', space=smem, size = 0x4, offset = 0x4, fixed_abs, tag = 'smem constant byte address 0x4 - core index']
  #allocation1 [shape = 'u32[144,128]{1,0:T(1,128)}', space=vmem, size = 0x12000, scoped, tag = 'internal scratch']
  %s0 = inlined_call_operand.vmem [shape: f32[512,36], index: 0, kind: input, shape index: {}]
  %s1 = inlined_call_operand.vmem [shape: f32[6,22], index: 1, kind: input, shape index: {}]
  %s2 = inlined_call_operand.vmem [shape: f32[512,30], index: 2, kind: output, shape index: {}]
  %s3 = sld [smem:[#allocation0]]
  $region41: #{tpu_custom_call.1} parent=0
    _
  %s5 = ssub.s32 1, %s3
  %s6 = scalar_select 0, %s5, %s3
  loop: start=0, step=1, limit=6
  $region2: #{tpu_custom_call.1} parent=0 // loop_pre_header
    _
  $region3: #{tpu_custom_call.1} parent=0 // loop_header
    %s8 = sphi 0, %s12
    %p9 = scmp.ge.s32.totalorder %s8, 6
    %s18 = sphi 0, %s20
    %s21 = sphi 0, %s18
    %s22 = sphi 0, %s21
    %s38 = sphi 0, %s22
    %s42 = sphi 0, %s42
    %s44 = sphi 0, %s42
    %s45 = sphi 0, %s44
    %s59 = sphi 0, %s45
    %s65 = sphi 0, %s67
    %s68 = sphi 0, %s65
    %s69 = sphi 0, %s68
    %s85 = sphi 0, %s69
  $region4: #{tpu_custom_call.1} parent=0 // loop_header_branch
    %11 = sbr.rel (%p9) target = $region8
  $region5: #{tpu_custom_call.1} parent=0 // loop_body
    %s13 = ssub.s32 %s8, 1
    %s14 = ssub.s32 %s8, 2
    %s15 = sadd.s32 %s8, 1
    %s16 = ssub.s32 %s8, %s15
    %p17 = scmp.eq.s32.totalorder %s16, 0
    %s19 = sadd.s32 %s18, 1
    %s20 = scalar_select %p17, %s18, %s19
    %p23 = pneg %p17
    %p24 = scmp.eq.s32.totalorder %s8, 3
    %p25 = por %p23, %p24
    %p26 = scmp.ne.s32.totalorder %s18, %s21
    %p27 = scmp.eq.s32.totalorder %s8, 0
    %p28 = por %p26, %p27
    %p29 = scmp.ne.s32.totalorder %s18, %s21
    %p30 = scmp.eq.s32.totalorder %s13, 3
    %p31 = por %p29, %p30
    %p32 = scmp.ne.s32.totalorder %s21, %s22
    %p33 = scmp.eq.s32.totalorder %s13, 0
    %p34 = por %p32, %p33
    %p35 = scmp.ne.s32.totalorder %s21, %s22
    %p36 = scmp.eq.s32.totalorder %s14, 3
    %p37 = por %p35, %p36
    %p39 = scmp.ne.s32.totalorder %s22, %s38
    %p40 = scmp.eq.s32.totalorder %s14, 0
    %p41 = por %p39, %p40
    %s43 = sadd.s32 %s42, 1
    %p46 = scmp.eq.s32.totalorder %s8, 3
    %p47 = scmp.ne.s32.totalorder %s42, %s44
    %p48 = scmp.eq.s32.totalorder %s8, 0
    %p49 = por %p47, %p48
    %p50 = scmp.ne.s32.totalorder %s42, %s44
    %p51 = scmp.eq.s32.totalorder %s13, 3
    %p52 = por %p50, %p51
    %p53 = scmp.ne.s32.totalorder %s44, %s45
    %p54 = scmp.eq.s32.totalorder %s13, 0
    %p55 = por %p53, %p54
    %p56 = scmp.ne.s32.totalorder %s44, %s45
    %p57 = scmp.eq.s32.totalorder %s14, 3
    %p58 = por %p56, %p57
    %p60 = scmp.ne.s32.totalorder %s45, %s59
    %p61 = scmp.eq.s32.totalorder %s14, 0
    %p62 = por %p60, %p61
    %s63 = ssub.s32 %s8, %s15
    %p64 = scmp.eq.s32.totalorder %s63, 0
    %s66 = sadd.s32 %s65, 1
    %s67 = scalar_select %p64, %s65, %s66
    %p70 = pneg %p64
    %p71 = scmp.eq.s32.totalorder %s8, 3
    %p72 = por %p70, %p71
    %p73 = scmp.ne.s32.totalorder %s65, %s68
    %p74 = scmp.eq.s32.totalorder %s8, 0
    %p75 = por %p73, %p74
    %p76 = scmp.ne.s32.totalorder %s65, %s68
    %p77 = scmp.eq.s32.totalorder %s13, 3
    %p78 = por %p76, %p77
    %p79 = scmp.ne.s32.totalorder %s68, %s69
    %p80 = scmp.eq.s32.totalorder %s13, 0
    %p81 = por %p79, %p80
    %p82 = scmp.ne.s32.totalorder %s68, %s69
    %p83 = scmp.eq.s32.totalorder %s14, 3
    %p84 = por %p82, %p83
    %p86 = scmp.ne.s32.totalorder %s69, %s85
    %p87 = scmp.eq.s32.totalorder %s14, 0
    %p88 = por %p86, %p87
    %p89 = scmp.le.s32.totalorder 1, %s8
    %p90 = scmp.lt.s32.totalorder %s8, 5
    %p91 = pnand %p89, %p90
    %p92 = pneg %p91
    // Predicated region
    $region9: #{tpu_custom_call.1} parent=5 // pred_check
      _
    $region10: #{tpu_custom_call.1} parent=5 // pred_check_branch
      %94 = sbr.rel (%p91) target = $region12
    $region11: #{tpu_custom_call.1} parent=5 // pred_region
      %s95 = ssub.s32 %s8, 1
      // Predicated region
      $region13: #{tpu_custom_call.1} parent=11 // pred_check
        %p96 = pneg %p55
      $region14: #{tpu_custom_call.1} parent=11 // pred_check_branch
        %98 = sbr.rel (%p96) target = $region16
      $region15: #{tpu_custom_call.1} parent=11 // pred_region
        _
      $region16: #{tpu_custom_call.1} parent=11 // pred_fallthru
        _
    $region12: #{tpu_custom_call.1} parent=5 // pred_fallthru
      _
    %p99 = scmp.lt.s32.totalorder %s8, 4
    // Predicated region
    $region17: #{tpu_custom_call.1} parent=5 // pred_check
      %p100 = pneg %p99
    $region18: #{tpu_custom_call.1} parent=5 // pred_check_branch
      %102 = sbr.rel (%p100) target = $region20
    $region19: #{tpu_custom_call.1} parent=5 // pred_region
      // Predicated region
      $region21: #{tpu_custom_call.1} parent=19 // pred_check
        %p103 = pneg %p28
      $region22: #{tpu_custom_call.1} parent=19 // pred_check_branch
        %105 = sbr.rel (%p103) target = $region24
      $region23: #{tpu_custom_call.1} parent=19 // pred_region
        %s106 = smul.u32 16, %s8
        %p107 = scmp.lt.s32.totalorder %s106, 63
        %s108 = scalar_select %p107, %s106, 63
        %s109 = smul.addr %s108, 8
        %s110 = scalar_lea.vmem %s0, %s109
        %s111 = smul.u32 16, %s8
      $region24: #{tpu_custom_call.1} parent=19 // pred_fallthru
        _
    $region20: #{tpu_custom_call.1} parent=5 // pred_fallthru
      _
    %p112 = scmp.le.s32.totalorder 1, %s8
    %p113 = scmp.lt.s32.totalorder %s8, 5
    %p114 = pnand %p112, %p113
    %p115 = pneg %p114
    // Predicated region
    $region25: #{tpu_custom_call.1} parent=5 // pred_check
      _
    $region26: #{tpu_custom_call.1} parent=5 // pred_check_branch
      %117 = sbr.rel (%p114) target = $region28
    $region27: #{tpu_custom_call.1} parent=5 // pred_region
      %s118 = ssub.s32 %s8, 1
      %s119 = smul.u32 16, %s13
      %p120 = scmp.lt.s32.totalorder %s119, 63
      %s121 = scalar_select %p120, %s119, 63
      %s122 = smul.addr %s121, 8
      %s123 = scalar_lea.vmem %s0, %s122
      %p124 = pneg %p34
      %p125 = pneg %p31
      %p126 = pneg %p55
      %p127 = pneg %p52
      %p128 = pneg %p81
      %p129 = pneg %p78
      %s130 = smul.u32 16, %s13
      %p131 = scmp.lt.s32.totalorder %s130, 63
      %s132 = scalar_select %p131, %s130, 63
      %s133 = smul.addr %s132, 8
      %s134 = scalar_lea.vmem %s2, %s133
      %s135 = smul.u32 16, %s13
      %p136 = scmp.lt.s32.totalorder %s135, 63
      %s137 = scalar_select %p136, %s135, 63
      %s138 = smul.addr %s137, 8
      %s139 = scalar_lea.vmem %s0, %s138
      %s140 = smul.u32 16, %s13
      %s141 = smul.u32 16, %s13
      %p142 = scmp.lt.s32.totalorder %s141, 63
      %s143 = scalar_select %p142, %s141, 63
      %s144 = smul.addr %s143, 8
      %s145 = scalar_lea.vmem %s2, %s144
      %s146 = smul.u32 16, %s13
      %v147 = vld [vmem:[%s139] sm:$0xff]
      %v148 = vld [vmem:[%s139 + $0x8] sm:$0xff]
      %v149 = vld [vmem:[%s139 + $0x10] sm:$0xff]
      %v150 = vld [vmem:[%s139 + $0x18] sm:$0xff]
      %v151 = vld [vmem:[%s139 + $0x20] sm:$0xff]
      %v152 = vld [vmem:[%s139 + $0x28] sm:$0xff]
      %v153 = vld [vmem:[%s139 + $0x30] sm:$0xff]
      %v154 = vld [vmem:[%s139 + $0x38] sm:$0xff]
      %v155 = vld [vmem:[%s139 + $0x40] sm:$0xff]
      %v156 = vld [vmem:[%s139 + $0x48] sm:$0xff]
      %v157 = vld [vmem:[%s139 + $0x50] sm:$0xff]
      %v158 = vld [vmem:[%s139 + $0x58] sm:$0xff]
      %v159 = vld [vmem:[%s139 + $0x60] sm:$0xff]
      %v160 = vld [vmem:[%s139 + $0x68] sm:$0xff]
      %v161 = vld [vmem:[%s139 + $0x70] sm:$0xff]
      %v162 = vld [vmem:[%s139 + $0x78] sm:$0xff]
      %v163 = vxor.u32 %v147, 2147483648
      %v164 = vxor.u32 %v148, 2147483648
      %v165 = vxor.u32 %v149, 2147483648
      %v166 = vxor.u32 %v150, 2147483648
      %v167 = vxor.u32 %v151, 2147483648
      %v168 = vxor.u32 %v152, 2147483648
      %v169 = vxor.u32 %v153, 2147483648
      %v170 = vxor.u32 %v154, 2147483648
      %v171 = vxor.u32 %v155, 2147483648
      %v172 = vxor.u32 %v156, 2147483648
      %v173 = vxor.u32 %v157, 2147483648
      %v174 = vxor.u32 %v158, 2147483648
      %v175 = vxor.u32 %v159, 2147483648
      %v176 = vxor.u32 %v160, 2147483648
      %v177 = vxor.u32 %v161, 2147483648
      %v178 = vxor.u32 %v162, 2147483648
      %v179 = vmul.f32 %v163, 1.442695
      %v180 = vpow.pop %v179
      %v181 = vmul.f32 %v164, 1.442695
      %v182 = vpow.pop %v181
      %v183 = vmul.f32 %v165, 1.442695
      %v184 = vpow.pop %v183
      %v185 = vmul.f32 %v166, 1.442695
      %v186 = vpow.pop %v185
      %v187 = vmul.f32 %v167, 1.442695
      %v188 = vpow.pop %v187
      %v189 = vmul.f32 %v168, 1.442695
      %v190 = vpow.pop %v189
      %v191 = vmul.f32 %v169, 1.442695
      %v192 = vpow.pop %v191
      %v193 = vmul.f32 %v170, 1.442695
      %v194 = vpow.pop %v193
      %v195 = vmul.f32 %v171, 1.442695
      %v196 = vpow.pop %v195
      %v197 = vmul.f32 %v172, 1.442695
      %v198 = vpow.pop %v197
      %v199 = vmul.f32 %v173, 1.442695
      %v200 = vpow.pop %v199
      %v201 = vmul.f32 %v174, 1.442695
      %v202 = vpow.pop %v201
      %v203 = vmul.f32 %v175, 1.442695
      %v204 = vpow.pop %v203
      %v205 = vmul.f32 %v176, 1.442695
      %v206 = vpow.pop %v205
      %v207 = vmul.f32 %v177, 1.442695
      %v208 = vpow.pop %v207
      %v209 = vmul.f32 %v178, 1.442695
      %v210 = vpow.pop %v209
      %v211 = vadd.f32 %v180, 1.0
      %v212 = vadd.f32 %v182, 1.0
      %v213 = vadd.f32 %v184, 1.0
      %v214 = vadd.f32 %v186, 1.0
      %v215 = vadd.f32 %v188, 1.0
      %v216 = vadd.f32 %v190, 1.0
      %v217 = vadd.f32 %v192, 1.0
      %v218 = vadd.f32 %v194, 1.0
      %v219 = vadd.f32 %v196, 1.0
      %v220 = vadd.f32 %v198, 1.0
      %v221 = vadd.f32 %v200, 1.0
      %v222 = vadd.f32 %v202, 1.0
      %v223 = vadd.f32 %v204, 1.0
      %v224 = vadd.f32 %v206, 1.0
      %v225 = vadd.f32 %v208, 1.0
      %v226 = vadd.f32 %v210, 1.0
      %v227 = vrcp.pop %v211
      %v228 = vmul.f32 1.0, %v227
      %v229 = vrcp.pop %v212
      %v230 = vmul.f32 1.0, %v229
      %v231 = vrcp.pop %v213
      %v232 = vmul.f32 1.0, %v231
      %v233 = vrcp.pop %v214
      %v234 = vmul.f32 1.0, %v233
      %v235 = vrcp.pop %v215
      %v236 = vmul.f32 1.0, %v235
      %v237 = vrcp.pop %v216
      %v238 = vmul.f32 1.0, %v237
      %v239 = vrcp.pop %v217
      %v240 = vmul.f32 1.0, %v239
      %v241 = vrcp.pop %v218
      %v242 = vmul.f32 1.0, %v241
      %v243 = vrcp.pop %v219
      %v244 = vmul.f32 1.0, %v243
      %v245 = vrcp.pop %v220
      %v246 = vmul.f32 1.0, %v245
      %v247 = vrcp.pop %v221
      %v248 = vmul.f32 1.0, %v247
      %v249 = vrcp.pop %v222
      %v250 = vmul.f32 1.0, %v249
      %v251 = vrcp.pop %v223
      %v252 = vmul.f32 1.0, %v251
      %v253 = vrcp.pop %v224
      %v254 = vmul.f32 1.0, %v253
      %v255 = vrcp.pop %v225
      %v256 = vmul.f32 1.0, %v255
      %v257 = vrcp.pop %v226
      %v258 = vmul.f32 1.0, %v257
      %v259 = vmul.f32 %v147, %v228
      %v260 = vmul.f32 %v148, %v230
      %v261 = vmul.f32 %v149, %v232
      %v262 = vmul.f32 %v150, %v234
      %v263 = vmul.f32 %v151, %v236
      %v264 = vmul.f32 %v152, %v238
      %v265 = vmul.f32 %v153, %v240
      %v266 = vmul.f32 %v154, %v242
      %v267 = vmul.f32 %v155, %v244
      %v268 = vmul.f32 %v156, %v246
      %v269 = vmul.f32 %v157, %v248
      %v270 = vmul.f32 %v158, %v250
      %v271 = vmul.f32 %v159, %v252
      %v272 = vmul.f32 %v160, %v254
      %v273 = vmul.f32 %v161, %v256
      %v274 = vmul.f32 %v162, %v258
      %v275 = vmul.f32 %v259, 1.674391
      %v276 = vmul.f32 %v260, 1.674391
      %v277 = vmul.f32 %v261, 1.674391
      %v278 = vmul.f32 %v262, 1.674391
      %v279 = vmul.f32 %v263, 1.674391
      %v280 = vmul.f32 %v264, 1.674391
      %v281 = vmul.f32 %v265, 1.674391
      %v282 = vmul.f32 %v266, 1.674391
      %v283 = vmul.f32 %v267, 1.674391
      %v284 = vmul.f32 %v268, 1.674391
      %v285 = vmul.f32 %v269, 1.674391
      %v286 = vmul.f32 %v270, 1.674391
      %v287 = vmul.f32 %v271, 1.674391
      %v288 = vmul.f32 %v272, 1.674391
      %v289 = vmul.f32 %v273, 1.674391
      %v290 = vmul.f32 %v274, 1.674391
      %v291 = vmul.f32 %v228, 1.8457713
      %v292 = vmul.f32 %v230, 1.8457713
      %v293 = vmul.f32 %v232, 1.8457713
      %v294 = vmul.f32 %v234, 1.8457713
      %v295 = vmul.f32 %v236, 1.8457713
      %v296 = vmul.f32 %v238, 1.8457713
      %v297 = vmul.f32 %v240, 1.8457713
      %v298 = vmul.f32 %v242, 1.8457713
      %v299 = vmul.f32 %v244, 1.8457713
      %v300 = vmul.f32 %v246, 1.8457713
      %v301 = vmul.f32 %v248, 1.8457713
      %v302 = vmul.f32 %v250, 1.8457713
      %v303 = vmul.f32 %v252, 1.8457713
      %v304 = vmul.f32 %v254, 1.8457713
      %v305 = vmul.f32 %v256, 1.8457713
      %v306 = vmul.f32 %v258, 1.8457713
      %v307 = vld [vmem:[%s1] sm:$0x3f]
      %324 = vrot.lane.b32.xlu0 %v291, 120
      %v325 = vpop.permute.xlu0 %324
      %326 = vrot.lane.b32.xlu0 %v292, 120
      %v327 = vpop.permute.xlu0 %326
      %328 = vrot.lane.b32.xlu0 %v293, 120
      %v329 = vpop.permute.xlu0 %328
      %330 = vrot.lane.b32.xlu0 %v294, 120
      %v331 = vpop.permute.xlu0 %330
      %332 = vrot.lane.b32.xlu0 %v295, 120
      %v333 = vpop.permute.xlu0 %332
      %334 = vrot.lane.b32.xlu0 %v296, 120
      %v335 = vpop.permute.xlu0 %334
      %336 = vrot.lane.b32.xlu0 %v297, 120
      %v337 = vpop.permute.xlu0 %336
      %338 = vrot.lane.b32.xlu0 %v298, 120
      %v339 = vpop.permute.xlu0 %338
      %340 = vrot.lane.b32.xlu0 %v299, 120
      %v341 = vpop.permute.xlu0 %340
      %342 = vrot.lane.b32.xlu0 %v300, 120
      %v343 = vpop.permute.xlu0 %342
      %344 = vrot.lane.b32.xlu0 %v301, 120
      %v345 = vpop.permute.xlu0 %344
      %346 = vrot.lane.b32.xlu0 %v302, 120
      %v347 = vpop.permute.xlu0 %346
      %348 = vrot.lane.b32.xlu0 %v303, 120
      %v349 = vpop.permute.xlu0 %348
      %350 = vrot.lane.b32.xlu0 %v304, 120
      %v351 = vpop.permute.xlu0 %350
      %352 = vrot.lane.b32.xlu0 %v305, 120
      %v353 = vpop.permute.xlu0 %352
      %354 = vrot.lane.b32.xlu0 %v306, 120
      %v355 = vpop.permute.xlu0 %354
      %vm356 = vcmask 48128
      %v357 = vsel %vm356, %v325, 0
      %v359 = vsel %vm356, %v327, 0
      %v361 = vsel %vm356, %v329, 0
      %v363 = vsel %vm356, %v331, 0
      %v365 = vsel %vm356, %v333, 0
      %v367 = vsel %vm356, %v335, 0
      %v369 = vsel %vm356, %v337, 0
      %v371 = vsel %vm356, %v339, 0
      %v373 = vsel %vm356, %v341, 0
      %v375 = vsel %vm356, %v343, 0
      %v377 = vsel %vm356, %v345, 0
      %v379 = vsel %vm356, %v347, 0
      %v381 = vsel %vm356, %v349, 0
      %v383 = vsel %vm356, %v351, 0
      %v385 = vsel %vm356, %v353, 0
      %v387 = vsel %vm356, %v355, 0
      %vm389 = vcmask 1045504
      %v391 = vsel %vm389, %v307, 0
      %393 = vmatprep.subr.mxu0 0.0
      %394 = vmatpush1.msra.mxu0 0.0
      %395 = vmatprep.subr.mxu0 0.0
      %396 = vmatpush1.msra.mxu0 0.0
      %397 = vmatprep.subr.mxu0 0.0
      %398 = vmatpush1.msra.mxu0 0.0
      %399 = vmatprep.subr.mxu0 0.0
      %400 = vmatpush1.msra.mxu0 0.0
      %401 = vmatprep.subr.mxu0 0.0
      %402 = vmatpush1.msra.mxu0 0.0
      %403 = vmatprep.subr.mxu0 0.0
      %404 = vmatpush1.msra.mxu0 0.0
      %405 = vmatprep.subr.mxu0 0.0
      %406 = vmatpush1.msra.mxu0 0.0
      %407 = vmatprep.subr.mxu0 0.0
      %408 = vmatpush1.msra.mxu0 0.0
      %409 = vmatprep.subr.mxu0 0.0
      %410 = vmatpush1.msra.mxu0 0.0
      %411 = vmatprep.subr.mxu0 0.0
      %412 = vmatpush1.msra.mxu0 0.0
      %413 = vmatprep.subr.mxu0 0.0
      %414 = vmatpush1.msra.mxu0 0.0
      %415 = vmatprep.subr.mxu0 0.0
      %416 = vmatpush1.msra.mxu0 0.0
      %417 = vmatprep.subr.mxu0 0.0
      %418 = vmatpush1.msra.mxu0 0.0
      %419 = vmatprep.subr.mxu0 0.0
      %420 = vmatpush1.msra.mxu0 0.0
      %421 = vmatprep.subr.mxu0 0.0
      %422 = vmatpush1.msra.mxu0 0.0
      %423 = vmatprep.subr.mxu0 0.0
      %424 = vmatpush1.msra.mxu0 %v391
      %425 = vmatprep.subr.mxu0 0.0
      %426 = vmatpush2.msra.mxu0 0.0
      %427 = vmatprep.subr.mxu0 0.0
      %428 = vmatpush2.msra.mxu0 0.0
      %429 = vmatprep.subr.mxu0 0.0
      %430 = vmatpush2.msra.mxu0 0.0
      %431 = vmatprep.subr.mxu0 0.0
      %432 = vmatpush2.msra.mxu0 0.0
      %433 = vmatprep.subr.mxu0 0.0
      %434 = vmatpush2.msra.mxu0 0.0
      %435 = vmatprep.subr.mxu0 0.0
      %436 = vmatpush2.msra.mxu0 0.0
      %437 = vmatprep.subr.mxu0 0.0
      %438 = vmatpush2.msra.mxu0 0.0
      %439 = vmatprep.subr.mxu0 0.0
      %440 = vmatpush2.msra.mxu0 0.0
      %441 = vmatprep.subr.mxu0 0.0
      %442 = vmatpush2.msra.mxu0 0.0
      %443 = vmatprep.subr.mxu0 0.0
      %444 = vmatpush2.msra.mxu0 0.0
      %445 = vmatprep.subr.mxu0 0.0
      %446 = vmatpush2.msra.mxu0 0.0
      %447 = vmatprep.subr.mxu0 0.0
      %448 = vmatpush2.msra.mxu0 0.0
      %449 = vmatprep.subr.mxu0 0.0
      %450 = vmatpush2.msra.mxu0 0.0
      %451 = vmatprep.subr.mxu0 0.0
      %452 = vmatpush2.msra.mxu0 0.0
      %453 = vmatprep.subr.mxu0 0.0
      %454 = vmatpush2.msra.mxu0 0.0
      %455 = vmatprep.subr.mxu0 0.0
      %456 = vmatpush2.msra.mxu0 0.0
      %457 = vmatprep.mubr.f32.mxu0 0.0
      %458 = vmatmul.mubr.f32.gmra.mxu0 %v357
      %v459 = vpop.f32.mrf.mxu0
      %v460 = vadd.f32 0.0, %v459
      %v461 = vpop.f32.mrf.mxu0
      %462 = vmatprep.mubr.f32.mxu0 0.0
      %463 = vmatmul.mubr.f32.gmra.mxu0 %v359
      %v464 = vpop.f32.mrf.mxu0
      %v465 = vadd.f32 0.0, %v464
      %v466 = vpop.f32.mrf.mxu0
      %467 = vmatprep.mubr.f32.mxu0 0.0
      %468 = vmatmul.mubr.f32.gmra.mxu0 %v361
      %v469 = vpop.f32.mrf.mxu0
      %v470 = vadd.f32 0.0, %v469
      %v471 = vpop.f32.mrf.mxu0
      %472 = vmatprep.mubr.f32.mxu0 0.0
      %473 = vmatmul.mubr.f32.gmra.mxu0 %v363
      %v474 = vpop.f32.mrf.mxu0
      %v475 = vadd.f32 0.0, %v474
      %v476 = vpop.f32.mrf.mxu0
      %477 = vmatprep.mubr.f32.mxu0 0.0
      %478 = vmatmul.mubr.f32.gmra.mxu0 %v365
      %v479 = vpop.f32.mrf.mxu0
      %v480 = vadd.f32 0.0, %v479
      %v481 = vpop.f32.mrf.mxu0
      %482 = vmatprep.mubr.f32.mxu0 0.0
      %483 = vmatmul.mubr.f32.gmra.mxu0 %v367
      %v484 = vpop.f32.mrf.mxu0
      %v485 = vadd.f32 0.0, %v484
      %v486 = vpop.f32.mrf.mxu0
      %487 = vmatprep.mubr.f32.mxu0 0.0
      %488 = vmatmul.mubr.f32.gmra.mxu0 %v369
      %v489 = vpop.f32.mrf.mxu0
      %v490 = vadd.f32 0.0, %v489
      %v491 = vpop.f32.mrf.mxu0
      %492 = vmatprep.mubr.f32.mxu0 0.0
      %493 = vmatmul.mubr.f32.gmra.mxu0 %v371
      %v494 = vpop.f32.mrf.mxu0
      %v495 = vadd.f32 0.0, %v494
      %v496 = vpop.f32.mrf.mxu0
      %497 = vmatprep.mubr.f32.mxu0 0.0
      %498 = vmatmul.mubr.f32.gmra.mxu0 %v373
      %v499 = vpop.f32.mrf.mxu0
      %v500 = vadd.f32 0.0, %v499
      %v501 = vpop.f32.mrf.mxu0
      %502 = vmatprep.mubr.f32.mxu0 0.0
      %503 = vmatmul.mubr.f32.gmra.mxu0 %v375
      %v504 = vpop.f32.mrf.mxu0
      %v505 = vadd.f32 0.0, %v504
      %v506 = vpop.f32.mrf.mxu0
      %507 = vmatprep.mubr.f32.mxu0 0.0
      %508 = vmatmul.mubr.f32.gmra.mxu0 %v377
      %v509 = vpop.f32.mrf.mxu0
      %v510 = vadd.f32 0.0, %v509
      %v511 = vpop.f32.mrf.mxu0
      %512 = vmatprep.mubr.f32.mxu0 0.0
      %513 = vmatmul.mubr.f32.gmra.mxu0 %v379
      %v514 = vpop.f32.mrf.mxu0
      %v515 = vadd.f32 0.0, %v514
      %v516 = vpop.f32.mrf.mxu0
      %517 = vmatprep.mubr.f32.mxu0 0.0
      %518 = vmatmul.mubr.f32.gmra.mxu0 %v381
      %v519 = vpop.f32.mrf.mxu0
      %v520 = vadd.f32 0.0, %v519
      %v521 = vpop.f32.mrf.mxu0
      %522 = vmatprep.mubr.f32.mxu0 0.0
      %523 = vmatmul.mubr.f32.gmra.mxu0 %v383
      %v524 = vpop.f32.mrf.mxu0
      %v525 = vadd.f32 0.0, %v524
      %v526 = vpop.f32.mrf.mxu0
      %527 = vmatprep.mubr.f32.mxu0 0.0
      %528 = vmatmul.mubr.f32.gmra.mxu0 %v385
      %v529 = vpop.f32.mrf.mxu0
      %v530 = vadd.f32 0.0, %v529
      %v531 = vpop.f32.mrf.mxu0
      %532 = vmatprep.mubr.f32.mxu0 0.0
      %533 = vmatmul.mubr.f32.gmra.mxu0 %v387
      %v534 = vpop.f32.mrf.mxu0
      %v535 = vadd.f32 0.0, %v534
      %v536 = vpop.f32.mrf.mxu0
      %537 = vdwg.mxu0
      %554 = vrot.lane.b32.xlu0 %v147, 114
      %v555 = vpop.permute.xlu0 %554
      %556 = vrot.lane.b32.xlu0 %v148, 114
      %v557 = vpop.permute.xlu0 %556
      %558 = vrot.lane.b32.xlu0 %v149, 114
      %v559 = vpop.permute.xlu0 %558
      %560 = vrot.lane.b32.xlu0 %v150, 114
      %v561 = vpop.permute.xlu0 %560
      %562 = vrot.lane.b32.xlu0 %v151, 114
      %v563 = vpop.permute.xlu0 %562
      %564 = vrot.lane.b32.xlu0 %v152, 114
      %v565 = vpop.permute.xlu0 %564
      %566 = vrot.lane.b32.xlu0 %v153, 114
      %v567 = vpop.permute.xlu0 %566
      %568 = vrot.lane.b32.xlu0 %v154, 114
      %v569 = vpop.permute.xlu0 %568
      %570 = vrot.lane.b32.xlu0 %v155, 114
      %v571 = vpop.permute.xlu0 %570
      %572 = vrot.lane.b32.xlu0 %v156, 114
      %v573 = vpop.permute.xlu0 %572
      %574 = vrot.lane.b32.xlu0 %v157, 114
      %v575 = vpop.permute.xlu0 %574
      %576 = vrot.lane.b32.xlu0 %v158, 114
      %v577 = vpop.permute.xlu0 %576
      %578 = vrot.lane.b32.xlu0 %v159, 114
      %v579 = vpop.permute.xlu0 %578
      %580 = vrot.lane.b32.xlu0 %v160, 114
      %v581 = vpop.permute.xlu0 %580
      %582 = vrot.lane.b32.xlu0 %v161, 114
      %v583 = vpop.permute.xlu0 %582
      %584 = vrot.lane.b32.xlu0 %v162, 114
      %v585 = vpop.permute.xlu0 %584
      %v602 = vmul.f32 %v460, %v555
      %v603 = vmul.f32 %v465, %v557
      %v604 = vmul.f32 %v470, %v559
      %v605 = vmul.f32 %v475, %v561
      %v606 = vmul.f32 %v480, %v563
      %v607 = vmul.f32 %v485, %v565
      %v608 = vmul.f32 %v490, %v567
      %v609 = vmul.f32 %v495, %v569
      %v610 = vmul.f32 %v500, %v571
      %v611 = vmul.f32 %v505, %v573
      %v612 = vmul.f32 %v510, %v575
      %v613 = vmul.f32 %v515, %v577
      %v614 = vmul.f32 %v520, %v579
      %v615 = vmul.f32 %v525, %v581
      %v616 = vmul.f32 %v530, %v583
      %v617 = vmul.f32 %v535, %v585
      %634 = vrot.lane.b32.xlu0 %v602, 8
      %v635 = vpop.permute.xlu0 %634
      %636 = vrot.lane.b32.xlu0 %v603, 8
      %v637 = vpop.permute.xlu0 %636
      %638 = vrot.lane.b32.xlu0 %v604, 8
      %v639 = vpop.permute.xlu0 %638
      %640 = vrot.lane.b32.xlu0 %v605, 8
      %v641 = vpop.permute.xlu0 %640
      %642 = vrot.lane.b32.xlu0 %v606, 8
      %v643 = vpop.permute.xlu0 %642
      %644 = vrot.lane.b32.xlu0 %v607, 8
      %v645 = vpop.permute.xlu0 %644
      %646 = vrot.lane.b32.xlu0 %v608, 8
      %v647 = vpop.permute.xlu0 %646
      %648 = vrot.lane.b32.xlu0 %v609, 8
      %v649 = vpop.permute.xlu0 %648
      %650 = vrot.lane.b32.xlu0 %v610, 8
      %v651 = vpop.permute.xlu0 %650
      %652 = vrot.lane.b32.xlu0 %v611, 8
      %v653 = vpop.permute.xlu0 %652
      %654 = vrot.lane.b32.xlu0 %v612, 8
      %v655 = vpop.permute.xlu0 %654
      %656 = vrot.lane.b32.xlu0 %v613, 8
      %v657 = vpop.permute.xlu0 %656
      %658 = vrot.lane.b32.xlu0 %v614, 8
      %v659 = vpop.permute.xlu0 %658
      %660 = vrot.lane.b32.xlu0 %v615, 8
      %v661 = vpop.permute.xlu0 %660
      %662 = vrot.lane.b32.xlu0 %v616, 8
      %v663 = vpop.permute.xlu0 %662
      %664 = vrot.lane.b32.xlu0 %v617, 8
      %v665 = vpop.permute.xlu0 %664
      %vm682 = vcmask 64512
      %v683 = vsel %vm682, %v275, %v635
      %v684 = vsel %vm682, %v276, %v637
      %v685 = vsel %vm682, %v277, %v639
      %v686 = vsel %vm682, %v278, %v641
      %v687 = vsel %vm682, %v279, %v643
      %v688 = vsel %vm682, %v280, %v645
      %v689 = vsel %vm682, %v281, %v647
      %v690 = vsel %vm682, %v282, %v649
      %v691 = vsel %vm682, %v283, %v651
      %v692 = vsel %vm682, %v284, %v653
      %v693 = vsel %vm682, %v285, %v655
      %v694 = vsel %vm682, %v286, %v657
      %v695 = vsel %vm682, %v287, %v659
      %v696 = vsel %vm682, %v288, %v661
      %v697 = vsel %vm682, %v289, %v663
      %v698 = vsel %vm682, %v290, %v665
      %vm699 = vcmask 244736
      %700 = vst.msk [vmem:[%s145] sm:$0xff] %vm699, %v683
      %701 = vst.msk [vmem:[%s145 + $0x8] sm:$0xff] %vm699, %v684
      %702 = vst.msk [vmem:[%s145 + $0x10] sm:$0xff] %vm699, %v685
      %703 = vst.msk [vmem:[%s145 + $0x18] sm:$0xff] %vm699, %v686
      %704 = vst.msk [vmem:[%s145 + $0x20] sm:$0xff] %vm699, %v687
      %705 = vst.msk [vmem:[%s145 + $0x28] sm:$0xff] %vm699, %v688
      %706 = vst.msk [vmem:[%s145 + $0x30] sm:$0xff] %vm699, %v689
      %707 = vst.msk [vmem:[%s145 + $0x38] sm:$0xff] %vm699, %v690
      %708 = vst.msk [vmem:[%s145 + $0x40] sm:$0xff] %vm699, %v691
      %709 = vst.msk [vmem:[%s145 + $0x48] sm:$0xff] %vm699, %v692
      %710 = vst.msk [vmem:[%s145 + $0x50] sm:$0xff] %vm699, %v693
      %711 = vst.msk [vmem:[%s145 + $0x58] sm:$0xff] %vm699, %v694
      %712 = vst.msk [vmem:[%s145 + $0x60] sm:$0xff] %vm699, %v695
      %713 = vst.msk [vmem:[%s145 + $0x68] sm:$0xff] %vm699, %v696
      %714 = vst.msk [vmem:[%s145 + $0x70] sm:$0xff] %vm699, %v697
      %715 = vst.msk [vmem:[%s145 + $0x78] sm:$0xff] %vm699, %v698
      %s716 = smul.u32 16, %s13
      %p717 = scmp.lt.s32.totalorder %s716, 63
      %s718 = scalar_select %p717, %s716, 63
      %s719 = smul.addr %s718, 8
      %s720 = scalar_lea.vmem %s2, %s719
      // Predicated region
      $region29: #{tpu_custom_call.1} parent=27 // pred_check
        %p721 = pneg %p78
      $region30: #{tpu_custom_call.1} parent=27 // pred_check_branch
        %723 = sbr.rel (%p721) target = $region32
      $region31: #{tpu_custom_call.1} parent=27 // pred_region
        %s724 = smul.u32 16, %s13
      $region32: #{tpu_custom_call.1} parent=27 // pred_fallthru
        _
    $region28: #{tpu_custom_call.1} parent=5 // pred_fallthru
      _
    %p725 = scmp.le.s32.totalorder 2, %s8
    // Predicated region
    $region33: #{tpu_custom_call.1} parent=5 // pred_check
      %p726 = pneg %p725
    $region34: #{tpu_custom_call.1} parent=5 // pred_check_branch
      %728 = sbr.rel (%p726) target = $region36
    $region35: #{tpu_custom_call.1} parent=5 // pred_region
      %s729 = ssub.s32 %s8, 2
      // Predicated region
      $region37: #{tpu_custom_call.1} parent=35 // pred_check
        %p730 = pneg %p84
      $region38: #{tpu_custom_call.1} parent=35 // pred_check_branch
        %732 = sbr.rel (%p730) target = $region40
      $region39: #{tpu_custom_call.1} parent=35 // pred_region
        %s733 = smul.u32 16, %s14
        %p734 = scmp.lt.s32.totalorder %s733, 63
        %s735 = scalar_select %p734, %s733, 63
        %s736 = smul.addr %s735, 8
        %s737 = scalar_lea.vmem %s2, %s736
      $region40: #{tpu_custom_call.1} parent=35 // pred_fallthru
        _
    $region36: #{tpu_custom_call.1} parent=5 // pred_fallthru
      _
  $region6: #{tpu_custom_call.1} parent=0 // loop_footer
    %s12 = sadd.s32 1, %s8
  $region7: #{tpu_custom_call.1} parent=0 // loop_footer_branch
    %7 = sbr.rel target = $region3
  $region8: #{tpu_custom_call.1} parent=0 // loop_exit
    _

</llo_original>
